<compile_context>
chip_gen: v5e
topology: v5e:2x2
jax: 0.10.0
libtpu: 0.0.40
codegen_flags: <defaults>
</compile_context>

<pallas_src>
import functools

import jax
import jax.numpy as jnp
from jax.experimental import pallas as pl
from jax.experimental.pallas import tpu as pltpu

INPUT_SIZE = 12
HIDDEN_SIZE = 64
OUTPUT_SIZE = 4

LANES = 128            # padded feature width inside the kernel
NEG_MASK = -1e30       # large finite negative for padded logit lanes

# Parameter-slab row layout ((8,128)-aligned blocks).
W1_OFF = 0             # rows [  0,  16): W1, valid [0:12, 0:64]
W2_OFF = 16            # rows [ 16, 144): W2, valid [0:64, 0:64]
W3_OFF = 144           # rows [144, 272): W3, valid [0:64, 0:4]
BIAS_OFF = 272         # rows [272, 280): row 0 = b1, row 1 = b2, row 2 = b3(+mask)
SLAB_ROWS = 280        # multiple of 8


def _round_up(n, m):
    return ((n + m - 1) // m) * m


def mlp_kernel(x_ref, p_ref, o_ref):
    """One batch tile: x_ref (TB, 12), p_ref (280, 128), o_ref (TB, 4)."""
    x = x_ref[...]                                            # (TB, 12)

    w1 = p_ref[W1_OFF:W1_OFF + INPUT_SIZE, :]                 # (12, 128)
    w2 = p_ref[W2_OFF:W2_OFF + LANES, :]                      # (128, 128)
    w3 = p_ref[W3_OFF:W3_OFF + LANES, :]                      # (128, 128)
    b1 = p_ref[BIAS_OFF + 0:BIAS_OFF + 1, :]                  # (1, 128)
    b2 = p_ref[BIAS_OFF + 1:BIAS_OFF + 2, :]                  # (1, 128)
    b3 = p_ref[BIAS_OFF + 2:BIAS_OFF + 3, :]                  # (1, 128), lanes>=4 = -1e30

    # linear1 + relu  (padded lanes stay exactly 0: zero weights, zero bias)
    h = jnp.dot(x, w1, preferred_element_type=jnp.float32) + b1
    h = jnp.maximum(h, 0.0)

    # linear2 + relu
    h = jnp.dot(h, w2, preferred_element_type=jnp.float32) + b2
    h = jnp.maximum(h, 0.0)

    # linear3; padded output lanes get the -1e30 mask baked into b3
    logits = jnp.dot(h, w3, preferred_element_type=jnp.float32) + b3  # (TB, 128)

    # Numerically stable softmax over the last dim; exact normalization so
    # every output row sums to 1 (this is what the previous version got wrong
    # with the approximate reciprocal).
    m = jnp.max(logits, axis=-1, keepdims=True)
    e = jnp.exp(logits - m)
    denom = jnp.sum(e, axis=-1, keepdims=True)
    probs = e / denom                                          # (TB, 128)

    o_ref[...] = probs[:, :OUTPUT_SIZE].astype(o_ref.dtype)    # (TB, 4)


def pack_params(w1, b1, w2, b2, w3, b3):
    """Pack (in,out)-layout weights + biases into one (280, 128) f32 slab."""
    slab = jnp.zeros((SLAB_ROWS, LANES), jnp.float32)
    slab = slab.at[W1_OFF:W1_OFF + w1.shape[0], :w1.shape[1]].set(w1.astype(jnp.float32))
    slab = slab.at[W2_OFF:W2_OFF + w2.shape[0], :w2.shape[1]].set(w2.astype(jnp.float32))
    slab = slab.at[W3_OFF:W3_OFF + w3.shape[0], :w3.shape[1]].set(w3.astype(jnp.float32))
    slab = slab.at[BIAS_OFF + 0, :b1.size].set(b1.reshape(-1).astype(jnp.float32))
    slab = slab.at[BIAS_OFF + 1, :b2.size].set(b2.reshape(-1).astype(jnp.float32))
    # b3 row: real bias in lanes [0,4), large negative elsewhere so the
    # 128-lane softmax equals the 4-lane reference softmax.
    b3_row = jnp.full((LANES,), NEG_MASK, jnp.float32)
    b3_row = b3_row.at[:b3.size].set(b3.reshape(-1).astype(jnp.float32))
    slab = slab.at[BIAS_OFF + 2, :].set(b3_row)
    return slab


@functools.partial(jax.jit, static_argnames=("block_b",))
def nn_forward(x, param_slab, *, block_b=2048):
    """Forward pass for x of shape (B, 12) using the packed parameter slab."""
    B = x.shape[0]
    block_b = _round_up(max(block_b, 8), 8)

    # Batch tile: multiple of 8, capped at block_b, and chosen so that the
    # grid has >= 2 steps whenever B allows it (v7x: 2 TensorCores share the
    # "parallel" grid axis).
    tb = min(block_b, _round_up(max(pl.cdiv(B, 2), 1), 8))
    b_pad = _round_up(B, tb)

    x = x.astype(jnp.float32)
    if b_pad != B:
        # Only pad batch rows; the 12 feature columns go to the kernel as-is.
        x = jnp.pad(x, ((0, b_pad - B), (0, 0)))

    out = pl.pallas_call(
        mlp_kernel,
        out_shape=jax.ShapeDtypeStruct((b_pad, OUTPUT_SIZE), jnp.float32),
        grid=(b_pad // tb,),
        in_specs=[
            # activation blocks stream over the batch grid (last dim == full dim)
            pl.BlockSpec((tb, INPUT_SIZE), lambda i: (i, 0)),
            # parameter slab: constant block index -> fetched once, VMEM-resident
            pl.BlockSpec((SLAB_ROWS, LANES), lambda i: (0, 0)),
        ],
        out_specs=pl.BlockSpec((tb, OUTPUT_SIZE), lambda i: (i, 0)),
        compiler_params=pltpu.CompilerParams(
            dimension_semantics=("parallel",)),
    )(x, param_slab)

    return out[:B]


def init_params(key, input_size=INPUT_SIZE, hidden_size=HIDDEN_SIZE,
                output_size=OUTPUT_SIZE):
    """Deterministic init mimicking torch.nn.Linear (uniform +-1/sqrt(fan_in)).

    Weights are stored transposed vs. torch, i.e. (in_features, out_features),
    so the forward pass is `x @ W + b`.
    """
    ks = jax.random.split(key, 6)

    def linear(kw, kb, fan_in, fan_out):
        bound = 1.0 / jnp.sqrt(jnp.float32(fan_in))
        w = jax.random.uniform(kw, (fan_in, fan_out), jnp.float32, -bound, bound)
        b = jax.random.uniform(kb, (fan_out,), jnp.float32, -bound, bound)
        return w, b

    w1, b1 = linear(ks[0], ks[1], input_size, hidden_size)
    w2, b2 = linear(ks[2], ks[3], hidden_size, hidden_size)
    w3, b3 = linear(ks[4], ks[5], hidden_size, output_size)
    return (w1, b1, w2, b2, w3, b3)


def reference_forward(x, params):
    """Plain-JAX reference for correctness check."""
    w1, b1, w2, b2, w3, b3 = params
    hp = jax.lax.Precision.HIGHEST
    h = jnp.maximum(jnp.dot(x, w1, precision=hp) + b1, 0.0)
    h = jnp.maximum(jnp.dot(h, w2, precision=hp) + b2, 0.0)
    logits = jnp.dot(h, w3, precision=hp) + b3
    return jax.nn.softmax(logits, axis=-1)


if __name__ == "__main__":
    key = jax.random.PRNGKey(0)
    k_params, k_x1, k_x2 = jax.random.split(key, 3)

    params = init_params(k_params)
    slab = pack_params(*params)

    # Small batch (matches the module's typical use): grid = (1,).
    x_small = jax.random.normal(k_x1, (8, INPUT_SIZE), dtype=jnp.float32)
    out_small = jax.block_until_ready(nn_forward(x_small, slab))
    ref_small = reference_forward(x_small, params)
    assert out_small.shape == (8, OUTPUT_SIZE)
    assert jnp.allclose(out_small, ref_small, atol=1e-3, rtol=1e-3), \
        "mismatch vs reference (small batch)"
    assert jnp.allclose(jnp.sum(out_small, axis=-1), 1.0, atol=1e-3), \
        "softmax rows do not sum to 1 (small batch)"

    # Larger, non-multiple-of-tile batch: exercises grid > 1 (two tiles ->
    # both v7x TensorCores) plus batch-row padding.
    x_big = jax.random.normal(k_x2, (1000, INPUT_SIZE), dtype=jnp.float32)
    out_big = jax.block_until_ready(nn_forward(x_big, slab))
    ref_big = reference_forward(x_big, params)
    assert out_big.shape == (1000, OUTPUT_SIZE)
    assert jnp.allclose(out_big, ref_big, atol=1e-3, rtol=1e-3), \
        "mismatch vs reference (large batch)"
    assert jnp.allclose(jnp.sum(out_big, axis=-1), 1.0, atol=1e-3), \
        "softmax rows do not sum to 1 (large batch)"

    print("KERNEL_OK")
</pallas_src>

<mosaic_0001>
module attributes {stable_mosaic.version = 11 : i64} {
  func.func @mlp_kernel(%arg0: i32, %arg1: memref<8x12xf32, #tpu.memory_space<vmem>>, %arg2: memref<280x128xf32, #tpu.memory_space<vmem>>, %arg3: memref<8x4xf32, #tpu.memory_space<vmem>>) attributes {dimension_semantics = [#tpu.dimension_semantics<parallel>], iteration_bounds = array<i64: 1>, scalar_prefetch = 0 : i64, scratch_operands = 0 : i64, tpu.core_type = #tpu.core_type<tc>, window_params = [{transform_indices = @transform_0, window_bounds = array<i64: 8, 12>}, {pipeline_mode = #tpu.pipeline_mode<synchronous>, transform_indices = @transform_1, window_bounds = array<i64: 280, 128>}, {transform_indices = @transform_2, window_bounds = array<i64: 8, 4>}]} {
    %c0 = arith.constant 0 : index
    %c0_0 = arith.constant 0 : index
    %0 = vector.load %arg1[%c0, %c0_0] : memref<8x12xf32, #tpu.memory_space<vmem>>, vector<8x12xf32>
    %c0_1 = arith.constant 0 : index
    %c0_2 = arith.constant 0 : index
    %1 = vector.load %arg2[%c0_1, %c0_2] : memref<280x128xf32, #tpu.memory_space<vmem>>, vector<12x128xf32>
    %c16 = arith.constant 16 : index
    %c0_3 = arith.constant 0 : index
    %2 = vector.load %arg2[%c16, %c0_3] : memref<280x128xf32, #tpu.memory_space<vmem>>, vector<128x128xf32>
    %c144 = arith.constant 144 : index
    %c0_4 = arith.constant 0 : index
    %3 = vector.load %arg2[%c144, %c0_4] : memref<280x128xf32, #tpu.memory_space<vmem>>, vector<128x128xf32>
    %c272 = arith.constant 272 : index
    %c0_5 = arith.constant 0 : index
    %4 = vector.load %arg2[%c272, %c0_5] : memref<280x128xf32, #tpu.memory_space<vmem>>, vector<1x128xf32>
    %c273 = arith.constant 273 : index
    %c0_6 = arith.constant 0 : index
    %5 = vector.load %arg2[%c273, %c0_6] : memref<280x128xf32, #tpu.memory_space<vmem>>, vector<1x128xf32>
    %c274 = arith.constant 274 : index
    %c0_7 = arith.constant 0 : index
    %6 = vector.load %arg2[%c274, %c0_7] : memref<280x128xf32, #tpu.memory_space<vmem>>, vector<1x128xf32>
    %cst = arith.constant dense<0.000000e+00> : vector<8x128xf32>
    %7 = tpu.matmul %0, %1, %cst {dimension_numbers = #tpu.dot_dimension_numbers<[1], [0], [0], [1], [0, 0, 1, 1], [], []>} : vector<8x12xf32>, vector<12x128xf32>, vector<8x128xf32> -> vector<8x128xf32>
    %8 = vector.broadcast %4 : vector<1x128xf32> to vector<8x128xf32>
    %9 = arith.addf %7, %8 : vector<8x128xf32>
    %cst_8 = arith.constant 0.000000e+00 : f32
    %10 = vector.broadcast %cst_8 : f32 to vector<8x128xf32>
    %11 = arith.maximumf %9, %10 : vector<8x128xf32>
    %cst_9 = arith.constant dense<0.000000e+00> : vector<8x128xf32>
    %12 = tpu.matmul %11, %2, %cst_9 {dimension_numbers = #tpu.dot_dimension_numbers<[1], [0], [0], [1], [0, 0, 1, 1], [], []>} : vector<8x128xf32>, vector<128x128xf32>, vector<8x128xf32> -> vector<8x128xf32>
    %13 = vector.broadcast %5 : vector<1x128xf32> to vector<8x128xf32>
    %14 = arith.addf %12, %13 : vector<8x128xf32>
    %cst_10 = arith.constant 0.000000e+00 : f32
    %15 = vector.broadcast %cst_10 : f32 to vector<8x128xf32>
    %16 = arith.maximumf %14, %15 : vector<8x128xf32>
    %cst_11 = arith.constant dense<0.000000e+00> : vector<8x128xf32>
    %17 = tpu.matmul %16, %3, %cst_11 {dimension_numbers = #tpu.dot_dimension_numbers<[1], [0], [0], [1], [0, 0, 1, 1], [], []>} : vector<8x128xf32>, vector<128x128xf32>, vector<8x128xf32> -> vector<8x128xf32>
    %18 = vector.broadcast %6 : vector<1x128xf32> to vector<8x128xf32>
    %19 = arith.addf %17, %18 : vector<8x128xf32>
    %cst_12 = arith.constant dense<0xFF800000> : vector<8xf32>
    %20 = vector.multi_reduction <maximumf>, %19, %cst_12 [1] : vector<8x128xf32> to vector<8xf32>
    %21 = vector.shape_cast %20 : vector<8xf32> to vector<8x1xf32>
    %22 = vector.broadcast %21 : vector<8x1xf32> to vector<8x128xf32>
    %23 = arith.subf %19, %22 : vector<8x128xf32>
    %24 = math.exp %23 : vector<8x128xf32>
    %cst_13 = arith.constant dense<0.000000e+00> : vector<8xf32>
    %25 = vector.multi_reduction <add>, %24, %cst_13 [1] : vector<8x128xf32> to vector<8xf32>
    %26 = vector.shape_cast %25 : vector<8xf32> to vector<8x1xf32>
    %27 = vector.broadcast %26 : vector<8x1xf32> to vector<8x128xf32>
    %28 = arith.divf %24, %27 : vector<8x128xf32>
    %29 = vector.extract_strided_slice %28 {offsets = [0, 0], sizes = [8, 4], strides = [1, 1]} : vector<8x128xf32> to vector<8x4xf32>
    %c0_14 = arith.constant 0 : index
    %c0_15 = arith.constant 0 : index
    %30 = vector.load %arg3[%c0_14, %c0_15] : memref<8x4xf32, #tpu.memory_space<vmem>>, vector<8x4xf32>
    tpu.vector_store %arg3[%c0_14, %c0_15], %29 {strides = array<i32>} : memref<8x4xf32, #tpu.memory_space<vmem>>, vector<8x4xf32>,
    return
  }
  func.func @transform_0(%arg0: i32) -> (i32, i32) {
    %c0_i32 = arith.constant 0 : i32
    %c0_i32_0 = arith.constant 0 : i32
    return %arg0, %c0_i32 : i32, i32
  }
  func.func @transform_1(%arg0: i32) -> (i32, i32) {
    %c0_i32 = arith.constant 0 : i32
    %c0_i32_0 = arith.constant 0 : i32
    %c0_i32_1 = arith.constant 0 : i32
    return %c0_i32, %c0_i32_0 : i32, i32
  }
  func.func @transform_2(%arg0: i32) -> (i32, i32) {
    %c0_i32 = arith.constant 0 : i32
    %c0_i32_0 = arith.constant 0 : i32
    return %arg0, %c0_i32 : i32, i32
  }
}

</mosaic_0001>

<llo_original>
// kernel: nn_forward.1
$region0: #{nn_forward.1}
  #allocation0 [shape = 'u32[]', space=smem, size = 0x4, offset = 0x4, fixed_abs, tag = 'smem constant byte address 0x4 - core index']
  #allocation1 [shape = 'u32[72,128]{1,0:T(1,128)}', space=vmem, size = 0x9000, scoped, tag = 'internal scratch']
  %s0 = inlined_call_operand.hbm [shape: f32[8,12], index: 0, kind: input, shape index: {}]
  %s1 = inlined_call_operand.hbm [shape: f32[280,128], index: 1, kind: input, shape index: {}]
  %s2 = inlined_call_operand.vmem [shape: f32[8,4], index: 2, kind: output, shape index: {}]
  %s3 = sld [smem:[#allocation0]]
  $region26: #{nn_forward.1} parent=0
    _
  %s5 = ssub.s32 1, %s3
  %s6 = scalar_select 0, %s5, %s3
  $region1: #{nn_forward.1} parent=0
    #allocation2 [shape = 'u8[4096]{0}', space=vmem, size = 0x1000, scoped, tag = 'input window, operand 0, single buffered']
    #allocation3 [shape = 's32[1]{0}', space=sflag, size = 0x4, scoped, tag = 'scoped memory for nn_forward.1']
    #allocation4 [shape = 'u8[143360]{0}', space=vmem, size = 0x23000, scoped, tag = 'input window, operand 1, single buffered']
    #allocation5 [shape = 's32[1]{0}', space=sflag, size = 0x4, scoped, tag = 'scoped memory for nn_forward.1']
    %7 = vsyncpa [#allocation3], 0
    %8 = vsyncpa [#allocation5], 0
    // Predicated region
    $region2: #{nn_forward.1} parent=1 // pred_check
      _
    $region3: #{nn_forward.1} parent=1 // pred_check_branch
      %10 = sbr.rel (0) target = $region5
    $region4: #{nn_forward.1} parent=1 // pred_region
      %12 = vsyncadd [#allocation3], 0
      %s14 = sshll.u32 %s0, 4
      %s15 = int_to_ptr.hbm [resolvable:$true] %s14
      %s16 = sshll.u32 [#allocation2], 4
      %s17 = int_to_ptr.vmem [resolvable:$true] %s16
      %19 = dma.hbm_to_vmem [thread:$0]  %s15, 128, %s17, [#allocation3]
    $region5: #{nn_forward.1} parent=1 // pred_fallthru
      _
    // Predicated region
    $region6: #{nn_forward.1} parent=1 // pred_check
      _
    $region7: #{nn_forward.1} parent=1 // pred_check_branch
      %21 = sbr.rel (0) target = $region9
    $region8: #{nn_forward.1} parent=1 // pred_region
      %23 = vsyncadd [#allocation5], 0
      %s24 = sshll.u32 %s1, 4
      %s25 = int_to_ptr.hbm [resolvable:$true] %s24
      %s26 = sshll.u32 [#allocation4], 4
      %s27 = int_to_ptr.vmem [resolvable:$true] %s26
      %32 = dma.hbm_to_vmem [thread:$0]  %s25, 4480, %s27, [#allocation5], 128, 128, 8
    $region9: #{nn_forward.1} parent=1 // pred_fallthru
      _
    // Predicated region
    $region10: #{nn_forward.1} parent=1 // pred_check
      _
    $region11: #{nn_forward.1} parent=1 // pred_check_branch
      %34 = sbr.rel (0) target = $region13
    $region12: #{nn_forward.1} parent=1 // pred_region
      %36 = dma.done [#allocation3], 128
    $region13: #{nn_forward.1} parent=1 // pred_fallthru
      _
    // Predicated region
    $region14: #{nn_forward.1} parent=1 // pred_check
      _
    $region15: #{nn_forward.1} parent=1 // pred_check_branch
      %38 = sbr.rel (0) target = $region17
    $region16: #{nn_forward.1} parent=1 // pred_region
      %40 = dma.done [#allocation5], 4480
    $region17: #{nn_forward.1} parent=1 // pred_fallthru
      _
    %v41 = vld [vmem:[#allocation2] sm:$0xff]
    %v42 = vld [vmem:[#allocation4] sm:$0xff]
    %v43 = vld [vmem:[#allocation4 + $0x8] sm:$0xf]
    %v44 = vld [vmem:[#allocation4 + $0x10] sm:$0xff]
    %v45 = vld [vmem:[#allocation4 + $0x18] sm:$0xff]
    %v46 = vld [vmem:[#allocation4 + $0x20] sm:$0xff]
    %v47 = vld [vmem:[#allocation4 + $0x28] sm:$0xff]
    %v48 = vld [vmem:[#allocation4 + $0x30] sm:$0xff]
    %v49 = vld [vmem:[#allocation4 + $0x38] sm:$0xff]
    %v50 = vld [vmem:[#allocation4 + $0x40] sm:$0xff]
    %v51 = vld [vmem:[#allocation4 + $0x48] sm:$0xff]
    %v52 = vld [vmem:[#allocation4 + $0x50] sm:$0xff]
    %v53 = vld [vmem:[#allocation4 + $0x58] sm:$0xff]
    %v54 = vld [vmem:[#allocation4 + $0x60] sm:$0xff]
    %v55 = vld [vmem:[#allocation4 + $0x68] sm:$0xff]
    %v56 = vld [vmem:[#allocation4 + $0x70] sm:$0xff]
    %v57 = vld [vmem:[#allocation4 + $0x78] sm:$0xff]
    %v58 = vld [vmem:[#allocation4 + $0x80] sm:$0xff]
    %v59 = vld [vmem:[#allocation4 + $0x88] sm:$0xff]
    %v60 = vld [vmem:[#allocation4 + $0x90] sm:$0xff]
    %v61 = vld [vmem:[#allocation4 + $0x98] sm:$0xff]
    %v62 = vld [vmem:[#allocation4 + $0xa0] sm:$0xff]
    %v63 = vld [vmem:[#allocation4 + $0xa8] sm:$0xff]
    %v64 = vld [vmem:[#allocation4 + $0xb0] sm:$0xff]
    %v65 = vld [vmem:[#allocation4 + $0xb8] sm:$0xff]
    %v66 = vld [vmem:[#allocation4 + $0xc0] sm:$0xff]
    %v67 = vld [vmem:[#allocation4 + $0xc8] sm:$0xff]
    %v68 = vld [vmem:[#allocation4 + $0xd0] sm:$0xff]
    %v69 = vld [vmem:[#allocation4 + $0xd8] sm:$0xff]
    %v70 = vld [vmem:[#allocation4 + $0xe0] sm:$0xff]
    %v71 = vld [vmem:[#allocation4 + $0xe8] sm:$0xff]
    %v72 = vld [vmem:[#allocation4 + $0xf0] sm:$0xff]
    %v73 = vld [vmem:[#allocation4 + $0xf8] sm:$0xff]
    %v74 = vld [vmem:[#allocation4 + $0x100] sm:$0xff]
    %v75 = vld [vmem:[#allocation4 + $0x108] sm:$0xff]
    %v76 = vld [vmem:[#allocation4 + $0x110] sm:$0x1]
    %v77 = vld [vmem:[#allocation4 + $0x111] sm:$0x1]
    %v78 = vld [vmem:[#allocation4 + $0x112] sm:$0x1]
    %v79 = vperm.slane %v76, 0
    %vm80 = vcmask 97280
    %v82 = vsel %vm80, %v41, 0
    %vm84 = vcmask 1043456
    %v86 = vsel %vm84, %v43, 0
    %88 = vmatpush.msra.mxu0 0.0
    %89 = vmatpush.msra.mxu0 0.0
    %90 = vmatpush.msra.mxu0 0.0
    %91 = vmatpush.msra.mxu0 0.0
    %92 = vmatpush.msra.mxu0 0.0
    %93 = vmatpush.msra.mxu0 0.0
    %94 = vmatpush.msra.mxu0 0.0
    %95 = vmatpush.msra.mxu0 0.0
    %96 = vmatpush.msra.mxu0 0.0
    %97 = vmatpush.msra.mxu0 0.0
    %98 = vmatpush.msra.mxu0 0.0
    %99 = vmatpush.msra.mxu0 0.0
    %100 = vmatpush.msra.mxu0 0.0
    %101 = vmatpush.msra.mxu0 0.0
    %102 = vmatpush.msra.mxu0 %v86
    %103 = vmatpush.msra.mxu0 %v42
    %104 = vmatmul.f32.gmra.mxu0 %v82
    %v105 = vpop.f32.mrf.mxu0
    %v106 = vadd.f32 %v79, %v105
    %107 = vdwg.mxu0
    %v108 = vmax.f32 %v106, 0.0
    %v109 = vperm.slane %v77, 0
    %110 = vmatpush.msra.mxu0 %v59
    %111 = vmatpush.msra.mxu0 %v58
    %112 = vmatpush.msra.mxu0 %v57
    %113 = vmatpush.msra.mxu0 %v56
    %114 = vmatpush.msra.mxu0 %v55
    %115 = vmatpush.msra.mxu0 %v54
    %116 = vmatpush.msra.mxu0 %v53
    %117 = vmatpush.msra.mxu0 %v52
    %118 = vmatpush.msra.mxu0 %v51
    %119 = vmatpush.msra.mxu0 %v50
    %120 = vmatpush.msra.mxu0 %v49
    %121 = vmatpush.msra.mxu0 %v48
    %122 = vmatpush.msra.mxu0 %v47
    %123 = vmatpush.msra.mxu0 %v46
    %124 = vmatpush.msra.mxu0 %v45
    %125 = vmatpush.msra.mxu0 %v44
    %126 = vmatmul.f32.gmra.mxu0 %v108
    %v127 = vpop.f32.mrf.mxu0
    %v128 = vadd.f32 %v109, %v127
    %129 = vdwg.mxu0
    %v130 = vmax.f32 %v128, 0.0
    %v131 = vperm.slane %v78, 0
    %132 = vmatpush.msra.mxu0 %v75
    %133 = vmatpush.msra.mxu0 %v74
    %134 = vmatpush.msra.mxu0 %v73
    %135 = vmatpush.msra.mxu0 %v72
    %136 = vmatpush.msra.mxu0 %v71
    %137 = vmatpush.msra.mxu0 %v70
    %138 = vmatpush.msra.mxu0 %v69
    %139 = vmatpush.msra.mxu0 %v68
    %140 = vmatpush.msra.mxu0 %v67
    %141 = vmatpush.msra.mxu0 %v66
    %142 = vmatpush.msra.mxu0 %v65
    %143 = vmatpush.msra.mxu0 %v64
    %144 = vmatpush.msra.mxu0 %v63
    %145 = vmatpush.msra.mxu0 %v62
    %146 = vmatpush.msra.mxu0 %v61
    %147 = vmatpush.msra.mxu0 %v60
    %148 = vmatmul.f32.gmra.mxu0 %v130
    %v149 = vpop.f32.mrf.mxu0
    %v150 = vadd.f32 %v131, %v149
    %151 = vdwg.mxu0
    %152 = vmax.xlane.f32.xlu0 %v150
    %v153 = vpop.xlane.xlu0 %152
    %v154 = vsub.f32 %v150, %v153
    %v155 = vmul.f32 %v154, 1.442695
    %v156 = vpow.pop %v155
    %157 = vadd.xlane.f32.xlu0 %v156
    %v158 = vpop.xlane.xlu0 %157
    %v159 = vrcp.pop %v158
    %v160 = vmul.f32 %v158, %v159
    %v161 = vsub.f32 1.0, %v160
    %v162 = vmul.f32 %v159, %v161
    %v163 = vadd.f32 %v159, %v162
    %vm164 = vweird.f32 %v158
    %vm165 = vweird.f32 %v159
    %vm166 = vmor %vm164, %vm165
    %v167 = vsel %vm166, %v159, %v163
    %v168 = vand.u32 2147483647, %v158
    %vm169 = vcmp.eq.f32.partialorder %v168, 8.507059e+37
    %v170 = vand.u32 %v158, 2147483648
    %v171 = vor.u32 1.1754944e-38, %v170
    %v172 = vsel %vm169, %v171, %v167
    %v173 = vmul.f32 %v156, %v172
    %vm174 = vcmask 31744
    %175 = vst.msk [vmem:[%s2] sm:$0xff] %vm174, %v173
    // Predicated region
    $region18: #{nn_forward.1} parent=1 // pred_check
      _
    $region19: #{nn_forward.1} parent=1 // pred_check_branch
      %177 = sbr.rel (0) target = $region21
    $region20: #{nn_forward.1} parent=1 // pred_region
      _
    $region21: #{nn_forward.1} parent=1 // pred_fallthru
      _
    // Predicated region
    $region22: #{nn_forward.1} parent=1 // pred_check
      _
    $region23: #{nn_forward.1} parent=1 // pred_check_branch
      %179 = sbr.rel (0) target = $region25
    $region24: #{nn_forward.1} parent=1 // pred_region
      _
    $region25: #{nn_forward.1} parent=1 // pred_fallthru
      _
    %180 = vsyncpa [#allocation3], 1
    %181 = vsyncpa [#allocation5], 1

</llo_original>
